<compile_context>
chip_gen: v7x
topology: tpu7x:2x2x1
jax: 0.10.0
libtpu: 0.0.40
codegen_flags: <defaults>
</compile_context>

<pallas_src>
import functools

import jax
import jax.numpy as jnp
from jax import lax
from jax.experimental import pallas as pl
from jax.experimental.pallas import tpu as pltpu

BN_EPS = 1e-5


def fused_classifier_kernel(xw_ref, w_ref, b_ref, o_ref, *,
                            n_windows, n_batch, n_channels, pool_area):
    # xw_ref: (kh*kw, N, K)  K = C*P*P, columns already in PyTorch Flatten order
    # w_ref : (K, M_pad)     Linear weight, transposed and lane-padded
    # b_ref : (1, M_pad)
    # o_ref : (N, M_pad)
    K = n_channels * pool_area

    # --- AdaptiveMaxPool2d((P,P)) : max over the window axis -------------------
    # Static tree reduction over the (kh*kw) window slabs: log-depth dependency
    # chain on the VPU instead of a serial chain.
    slabs = [xw_ref[i] for i in range(n_windows)]        # each (N, K)
    while len(slabs) > 1:
        nxt = []
        for i in range(0, len(slabs) - 1, 2):
            nxt.append(jnp.maximum(slabs[i], slabs[i + 1]))
        if len(slabs) % 2 == 1:
            nxt.append(slabs[-1])
        slabs = nxt
    pooled = slabs[0]                                    # (N, K)

    # --- BatchNorm2d(affine=False), training-mode batch stats -----------------
    # Column k belongs to channel k // pool_area.  Build one-hot channel
    # matrices from iota (no integer division, no reshapes) and use tiny
    # matmuls to aggregate per-channel stats and broadcast them back per-column.
    k_kc = lax.broadcasted_iota(jnp.int32, (K, n_channels), 0)
    c_kc = lax.broadcasted_iota(jnp.int32, (K, n_channels), 1)
    e_kc = jnp.logical_and(k_kc >= c_kc * pool_area,
                           k_kc < (c_kc + 1) * pool_area).astype(jnp.float32)  # (K, C)
    c_ck = lax.broadcasted_iota(jnp.int32, (n_channels, K), 0)
    k_ck = lax.broadcasted_iota(jnp.int32, (n_channels, K), 1)
    e_ck = jnp.logical_and(k_ck >= c_ck * pool_area,
                           k_ck < (c_ck + 1) * pool_area).astype(jnp.float32)  # (C, K)

    inv_count = 1.0 / float(n_batch * pool_area)

    col_sum = jnp.sum(pooled, axis=0, keepdims=True)                      # (1, K)
    ch_mean = jnp.dot(col_sum, e_kc,
                      preferred_element_type=jnp.float32) * inv_count     # (1, C)
    mean_k = jnp.dot(ch_mean, e_ck,
                     preferred_element_type=jnp.float32)                  # (1, K)
    centered = pooled - mean_k                                            # (N, K)

    col_ss = jnp.sum(centered * centered, axis=0, keepdims=True)          # (1, K)
    ch_var = jnp.dot(col_ss, e_kc,
                     preferred_element_type=jnp.float32) * inv_count      # (1, C) biased var
    inv_k = jnp.dot(lax.rsqrt(ch_var + BN_EPS), e_ck,
                    preferred_element_type=jnp.float32)                   # (1, K)

    feat = centered * inv_k                                               # (N, K), Flatten order

    # --- Linear: feat @ W.T + b (weight pre-transposed & lane-padded) ---------
    o_ref[...] = (
        jnp.dot(feat, w_ref[...], preferred_element_type=jnp.float32) + b_ref[...]
    )


def classifier_forward(x, weight, bias, pool_size):
    """x: (N, C, H, W) f32 (NCHW); weight: (num_classes, C*P*P); bias: (num_classes,)."""
    N, C, H, W = x.shape
    P = pool_size
    # TODO(synk): adaptive pooling with H % P != 0 (uneven bins) not implemented.
    assert H % P == 0 and W % P == 0, "adaptive max pool implemented for divisible spatial dims"
    kh, kw = H // P, W // P
    K = C * P * P
    M = weight.shape[0]

    # Single layout repack (glue): (N, C, H, W) -> (kh*kw, N, C*P*P) so the pool
    # is a leading-axis max and the pooled columns are already in Flatten order.
    xw = x.reshape(N, C, P, kh, P, kw)
    xw = jnp.transpose(xw, (3, 5, 0, 1, 2, 4))      # (kh, kw, N, C, P, P)
    xw = xw.reshape(kh * kw, N, K)

    # Lane-pad the Linear output dim to a multiple of 128 for a dense store.
    M_pad = pl.cdiv(M, 128) * 128
    w_t = jnp.zeros((K, M_pad), jnp.float32).at[:, :M].set(jnp.transpose(weight))
    b2d = jnp.zeros((1, M_pad), jnp.float32).at[:, :M].set(bias)

    kernel = functools.partial(
        fused_classifier_kernel,
        n_windows=kh * kw, n_batch=N, n_channels=C, pool_area=P * P,
    )

    out = pl.pallas_call(
        kernel,
        out_shape=jax.ShapeDtypeStruct((N, M_pad), jnp.float32),
        in_specs=[pl.BlockSpec(memory_space=pltpu.MemorySpace.VMEM)] * 3,
        out_specs=pl.BlockSpec(memory_space=pltpu.MemorySpace.VMEM),
    )(xw, w_t, b2d)

    return out[:, :M]


def _reference_forward(x, weight, bias, pool_size):
    """Pure-JAX reference of the PyTorch module (for a sanity check)."""
    N, C, H, W = x.shape
    P = pool_size
    kh, kw = H // P, W // P
    pooled = jnp.max(x.reshape(N, C, P, kh, P, kw), axis=(3, 5))        # (N, C, P, P)
    mean = jnp.mean(pooled, axis=(0, 2, 3), keepdims=True)
    var = jnp.mean((pooled - mean) ** 2, axis=(0, 2, 3), keepdims=True)  # biased
    feat = ((pooled - mean) * lax.rsqrt(var + BN_EPS)).reshape(N, -1)
    return feat @ weight.T + bias


if __name__ == "__main__":
    # Small shapes consistent with the module: Classifier(nChannels=8,
    # num_classes=16, pool_size=2, pool_type='max'); input (N=2, C=8, 8, 8).
    N, C, H, W = 2, 8, 8, 8
    P = 2
    num_classes = 16
    K = C * P * P

    key = jax.random.PRNGKey(0)
    k_x, k_w = jax.random.split(key)

    x = jax.random.normal(k_x, (N, C, H, W), dtype=jnp.float32)

    # deterministic init matching Classifier.initilize():
    #   weight ~ Normal(0, sqrt(2/fout)), bias = 0
    std_val = (2.0 / num_classes) ** 0.5
    weight = std_val * jax.random.normal(k_w, (num_classes, K), dtype=jnp.float32)
    bias = jnp.zeros((num_classes,), dtype=jnp.float32)

    out = classifier_forward(x, weight, bias, P)
    out = jax.block_until_ready(out)
    assert out.shape == (N, num_classes) and out.dtype == jnp.float32

    ref = jax.block_until_ready(_reference_forward(x, weight, bias, P))
    assert jnp.allclose(out, ref, atol=5e-2, rtol=5e-2), "mismatch vs reference"

    print("KERNEL_OK")
</pallas_src>

<mosaic_0001>
module attributes {stable_mosaic.version = 11 : i64} {
  func.func @fused_classifier_kernel(%arg0: memref<16x2x32xf32, #tpu.memory_space<vmem>>, %arg1: memref<32x128xf32, #tpu.memory_space<vmem>>, %arg2: memref<1x128xf32, #tpu.memory_space<vmem>>, %arg3: memref<2x128xf32, #tpu.memory_space<vmem>>) attributes {dimension_semantics = [], scalar_prefetch = 0 : i64, scratch_operands = 0 : i64, tpu.core_type = #tpu.core_type<tc>} {
    %c0 = arith.constant 0 : index
    %c0_0 = arith.constant 0 : index
    %c0_1 = arith.constant 0 : index
    %0 = vector.load %arg0[%c0, %c0_0, %c0_1] : memref<16x2x32xf32, #tpu.memory_space<vmem>>, vector<1x2x32xf32>
    %1 = vector.shape_cast %0 : vector<1x2x32xf32> to vector<2x32xf32>
    %c1 = arith.constant 1 : index
    %c0_2 = arith.constant 0 : index
    %c0_3 = arith.constant 0 : index
    %2 = vector.load %arg0[%c1, %c0_2, %c0_3] : memref<16x2x32xf32, #tpu.memory_space<vmem>>, vector<1x2x32xf32>
    %3 = vector.shape_cast %2 : vector<1x2x32xf32> to vector<2x32xf32>
    %c2 = arith.constant 2 : index
    %c0_4 = arith.constant 0 : index
    %c0_5 = arith.constant 0 : index
    %4 = vector.load %arg0[%c2, %c0_4, %c0_5] : memref<16x2x32xf32, #tpu.memory_space<vmem>>, vector<1x2x32xf32>
    %5 = vector.shape_cast %4 : vector<1x2x32xf32> to vector<2x32xf32>
    %c3 = arith.constant 3 : index
    %c0_6 = arith.constant 0 : index
    %c0_7 = arith.constant 0 : index
    %6 = vector.load %arg0[%c3, %c0_6, %c0_7] : memref<16x2x32xf32, #tpu.memory_space<vmem>>, vector<1x2x32xf32>
    %7 = vector.shape_cast %6 : vector<1x2x32xf32> to vector<2x32xf32>
    %c4 = arith.constant 4 : index
    %c0_8 = arith.constant 0 : index
    %c0_9 = arith.constant 0 : index
    %8 = vector.load %arg0[%c4, %c0_8, %c0_9] : memref<16x2x32xf32, #tpu.memory_space<vmem>>, vector<1x2x32xf32>
    %9 = vector.shape_cast %8 : vector<1x2x32xf32> to vector<2x32xf32>
    %c5 = arith.constant 5 : index
    %c0_10 = arith.constant 0 : index
    %c0_11 = arith.constant 0 : index
    %10 = vector.load %arg0[%c5, %c0_10, %c0_11] : memref<16x2x32xf32, #tpu.memory_space<vmem>>, vector<1x2x32xf32>
    %11 = vector.shape_cast %10 : vector<1x2x32xf32> to vector<2x32xf32>
    %c6 = arith.constant 6 : index
    %c0_12 = arith.constant 0 : index
    %c0_13 = arith.constant 0 : index
    %12 = vector.load %arg0[%c6, %c0_12, %c0_13] : memref<16x2x32xf32, #tpu.memory_space<vmem>>, vector<1x2x32xf32>
    %13 = vector.shape_cast %12 : vector<1x2x32xf32> to vector<2x32xf32>
    %c7 = arith.constant 7 : index
    %c0_14 = arith.constant 0 : index
    %c0_15 = arith.constant 0 : index
    %14 = vector.load %arg0[%c7, %c0_14, %c0_15] : memref<16x2x32xf32, #tpu.memory_space<vmem>>, vector<1x2x32xf32>
    %15 = vector.shape_cast %14 : vector<1x2x32xf32> to vector<2x32xf32>
    %c8 = arith.constant 8 : index
    %c0_16 = arith.constant 0 : index
    %c0_17 = arith.constant 0 : index
    %16 = vector.load %arg0[%c8, %c0_16, %c0_17] : memref<16x2x32xf32, #tpu.memory_space<vmem>>, vector<1x2x32xf32>
    %17 = vector.shape_cast %16 : vector<1x2x32xf32> to vector<2x32xf32>
    %c9 = arith.constant 9 : index
    %c0_18 = arith.constant 0 : index
    %c0_19 = arith.constant 0 : index
    %18 = vector.load %arg0[%c9, %c0_18, %c0_19] : memref<16x2x32xf32, #tpu.memory_space<vmem>>, vector<1x2x32xf32>
    %19 = vector.shape_cast %18 : vector<1x2x32xf32> to vector<2x32xf32>
    %c10 = arith.constant 10 : index
    %c0_20 = arith.constant 0 : index
    %c0_21 = arith.constant 0 : index
    %20 = vector.load %arg0[%c10, %c0_20, %c0_21] : memref<16x2x32xf32, #tpu.memory_space<vmem>>, vector<1x2x32xf32>
    %21 = vector.shape_cast %20 : vector<1x2x32xf32> to vector<2x32xf32>
    %c11 = arith.constant 11 : index
    %c0_22 = arith.constant 0 : index
    %c0_23 = arith.constant 0 : index
    %22 = vector.load %arg0[%c11, %c0_22, %c0_23] : memref<16x2x32xf32, #tpu.memory_space<vmem>>, vector<1x2x32xf32>
    %23 = vector.shape_cast %22 : vector<1x2x32xf32> to vector<2x32xf32>
    %c12 = arith.constant 12 : index
    %c0_24 = arith.constant 0 : index
    %c0_25 = arith.constant 0 : index
    %24 = vector.load %arg0[%c12, %c0_24, %c0_25] : memref<16x2x32xf32, #tpu.memory_space<vmem>>, vector<1x2x32xf32>
    %25 = vector.shape_cast %24 : vector<1x2x32xf32> to vector<2x32xf32>
    %c13 = arith.constant 13 : index
    %c0_26 = arith.constant 0 : index
    %c0_27 = arith.constant 0 : index
    %26 = vector.load %arg0[%c13, %c0_26, %c0_27] : memref<16x2x32xf32, #tpu.memory_space<vmem>>, vector<1x2x32xf32>
    %27 = vector.shape_cast %26 : vector<1x2x32xf32> to vector<2x32xf32>
    %c14 = arith.constant 14 : index
    %c0_28 = arith.constant 0 : index
    %c0_29 = arith.constant 0 : index
    %28 = vector.load %arg0[%c14, %c0_28, %c0_29] : memref<16x2x32xf32, #tpu.memory_space<vmem>>, vector<1x2x32xf32>
    %29 = vector.shape_cast %28 : vector<1x2x32xf32> to vector<2x32xf32>
    %c15 = arith.constant 15 : index
    %c0_30 = arith.constant 0 : index
    %c0_31 = arith.constant 0 : index
    %30 = vector.load %arg0[%c15, %c0_30, %c0_31] : memref<16x2x32xf32, #tpu.memory_space<vmem>>, vector<1x2x32xf32>
    %31 = vector.shape_cast %30 : vector<1x2x32xf32> to vector<2x32xf32>
    %32 = arith.maximumf %1, %3 : vector<2x32xf32>
    %33 = arith.maximumf %5, %7 : vector<2x32xf32>
    %34 = arith.maximumf %9, %11 : vector<2x32xf32>
    %35 = arith.maximumf %13, %15 : vector<2x32xf32>
    %36 = arith.maximumf %17, %19 : vector<2x32xf32>
    %37 = arith.maximumf %21, %23 : vector<2x32xf32>
    %38 = arith.maximumf %25, %27 : vector<2x32xf32>
    %39 = arith.maximumf %29, %31 : vector<2x32xf32>
    %40 = arith.maximumf %32, %33 : vector<2x32xf32>
    %41 = arith.maximumf %34, %35 : vector<2x32xf32>
    %42 = arith.maximumf %36, %37 : vector<2x32xf32>
    %43 = arith.maximumf %38, %39 : vector<2x32xf32>
    %44 = arith.maximumf %40, %41 : vector<2x32xf32>
    %45 = arith.maximumf %42, %43 : vector<2x32xf32>
    %46 = arith.maximumf %44, %45 : vector<2x32xf32>
    %47 = tpu.iota {dimensions = array<i32: 0>} : vector<32x8xi32>
    %48 = tpu.iota {dimensions = array<i32: 1>} : vector<32x8xi32>
    %c4_i32 = arith.constant 4 : i32
    %49 = vector.broadcast %c4_i32 : i32 to vector<32x8xi32>
    %50 = arith.muli %48, %49 : vector<32x8xi32>
    %51 = arith.cmpi sge, %47, %50 : vector<32x8xi32>
    %c1_i32 = arith.constant 1 : i32
    %52 = vector.broadcast %c1_i32 : i32 to vector<32x8xi32>
    %53 = arith.addi %48, %52 : vector<32x8xi32>
    %c4_i32_32 = arith.constant 4 : i32
    %54 = vector.broadcast %c4_i32_32 : i32 to vector<32x8xi32>
    %55 = arith.muli %53, %54 : vector<32x8xi32>
    %56 = arith.cmpi slt, %47, %55 : vector<32x8xi32>
    %57 = arith.andi %51, %56 : vector<32x8xi1>
    %58 = arith.extui %57 : vector<32x8xi1> to vector<32x8xi32>
    %59 = arith.sitofp %58 : vector<32x8xi32> to vector<32x8xf32>
    %60 = tpu.iota {dimensions = array<i32: 0>} : vector<8x32xi32>
    %61 = tpu.iota {dimensions = array<i32: 1>} : vector<8x32xi32>
    %c4_i32_33 = arith.constant 4 : i32
    %62 = vector.broadcast %c4_i32_33 : i32 to vector<8x32xi32>
    %63 = arith.muli %60, %62 : vector<8x32xi32>
    %64 = arith.cmpi sge, %61, %63 : vector<8x32xi32>
    %c1_i32_34 = arith.constant 1 : i32
    %65 = vector.broadcast %c1_i32_34 : i32 to vector<8x32xi32>
    %66 = arith.addi %60, %65 : vector<8x32xi32>
    %c4_i32_35 = arith.constant 4 : i32
    %67 = vector.broadcast %c4_i32_35 : i32 to vector<8x32xi32>
    %68 = arith.muli %66, %67 : vector<8x32xi32>
    %69 = arith.cmpi slt, %61, %68 : vector<8x32xi32>
    %70 = arith.andi %64, %69 : vector<8x32xi1>
    %71 = arith.extui %70 : vector<8x32xi1> to vector<8x32xi32>
    %72 = arith.sitofp %71 : vector<8x32xi32> to vector<8x32xf32>
    %cst = arith.constant dense<0.000000e+00> : vector<32xf32>
    %73 = vector.multi_reduction <add>, %46, %cst [0] : vector<2x32xf32> to vector<32xf32>
    %74 = vector.shape_cast %73 : vector<32xf32> to vector<1x32xf32>
    %cst_36 = arith.constant dense<0.000000e+00> : vector<1x8xf32>
    %75 = tpu.matmul %74, %59, %cst_36 {dimension_numbers = #tpu.dot_dimension_numbers<[1], [0], [0], [1], [0, 0, 1, 1], [], []>} : vector<1x32xf32>, vector<32x8xf32>, vector<1x8xf32> -> vector<1x8xf32>
    %cst_37 = arith.constant 1.250000e-01 : f32
    %76 = vector.broadcast %cst_37 : f32 to vector<1x8xf32>
    %77 = arith.mulf %75, %76 : vector<1x8xf32>
    %cst_38 = arith.constant dense<0.000000e+00> : vector<1x32xf32>
    %78 = tpu.matmul %77, %72, %cst_38 {dimension_numbers = #tpu.dot_dimension_numbers<[1], [0], [0], [1], [0, 0, 1, 1], [], []>} : vector<1x8xf32>, vector<8x32xf32>, vector<1x32xf32> -> vector<1x32xf32>
    %79 = vector.broadcast %78 : vector<1x32xf32> to vector<2x32xf32>
    %80 = arith.subf %46, %79 : vector<2x32xf32>
    %81 = arith.mulf %80, %80 : vector<2x32xf32>
    %cst_39 = arith.constant dense<0.000000e+00> : vector<32xf32>
    %82 = vector.multi_reduction <add>, %81, %cst_39 [0] : vector<2x32xf32> to vector<32xf32>
    %83 = vector.shape_cast %82 : vector<32xf32> to vector<1x32xf32>
    %cst_40 = arith.constant dense<0.000000e+00> : vector<1x8xf32>
    %84 = tpu.matmul %83, %59, %cst_40 {dimension_numbers = #tpu.dot_dimension_numbers<[1], [0], [0], [1], [0, 0, 1, 1], [], []>} : vector<1x32xf32>, vector<32x8xf32>, vector<1x8xf32> -> vector<1x8xf32>
    %cst_41 = arith.constant 1.250000e-01 : f32
    %85 = vector.broadcast %cst_41 : f32 to vector<1x8xf32>
    %86 = arith.mulf %84, %85 : vector<1x8xf32>
    %cst_42 = arith.constant 9.99999974E-6 : f32
    %87 = vector.broadcast %cst_42 : f32 to vector<1x8xf32>
    %88 = arith.addf %86, %87 : vector<1x8xf32>
    %89 = math.rsqrt %88 : vector<1x8xf32>
    %cst_43 = arith.constant dense<0.000000e+00> : vector<1x32xf32>
    %90 = tpu.matmul %89, %72, %cst_43 {dimension_numbers = #tpu.dot_dimension_numbers<[1], [0], [0], [1], [0, 0, 1, 1], [], []>} : vector<1x8xf32>, vector<8x32xf32>, vector<1x32xf32> -> vector<1x32xf32>
    %91 = vector.broadcast %90 : vector<1x32xf32> to vector<2x32xf32>
    %92 = arith.mulf %80, %91 : vector<2x32xf32>
    %c0_44 = arith.constant 0 : index
    %c0_45 = arith.constant 0 : index
    %93 = vector.load %arg1[%c0_44, %c0_45] : memref<32x128xf32, #tpu.memory_space<vmem>>, vector<32x128xf32>
    %cst_46 = arith.constant dense<0.000000e+00> : vector<2x128xf32>
    %94 = tpu.matmul %92, %93, %cst_46 {dimension_numbers = #tpu.dot_dimension_numbers<[1], [0], [0], [1], [0, 0, 1, 1], [], []>} : vector<2x32xf32>, vector<32x128xf32>, vector<2x128xf32> -> vector<2x128xf32>
    %c0_47 = arith.constant 0 : index
    %c0_48 = arith.constant 0 : index
    %95 = vector.load %arg2[%c0_47, %c0_48] : memref<1x128xf32, #tpu.memory_space<vmem>>, vector<1x128xf32>
    %96 = vector.broadcast %95 : vector<1x128xf32> to vector<2x128xf32>
    %97 = arith.addf %94, %96 : vector<2x128xf32>
    %c0_49 = arith.constant 0 : index
    %c0_50 = arith.constant 0 : index
    %98 = vector.load %arg3[%c0_49, %c0_50] : memref<2x128xf32, #tpu.memory_space<vmem>>, vector<2x128xf32>
    tpu.vector_store %arg3[%c0_49, %c0_50], %97 {strides = array<i32>} : memref<2x128xf32, #tpu.memory_space<vmem>>, vector<2x128xf32>,
    return
  }
}

</mosaic_0001>

<llo_original>
// kernel: tpu_custom_call.1
$region0: #{tpu_custom_call.1}
  #allocation0 [shape = 'u32[]', space=smem, size = 0x4, offset = 0x4, fixed_abs, tag = 'smem constant byte address 0x4 - core index']
  #allocation1 [shape = 'u32[144,128]{1,0:T(1,128)}', space=vmem, size = 0x12000, scoped, tag = 'internal scratch']
  %s0 = inlined_call_operand.hbm [shape: f32[16,2,32], index: 0, kind: input, shape index: {}]
  %s1 = inlined_call_operand.hbm [shape: f32[32,128], index: 1, kind: input, shape index: {}]
  %s2 = inlined_call_operand.vmem [shape: f32[1,128], index: 2, kind: input, shape index: {}]
  %s3 = inlined_call_operand.hbm [shape: f32[2,128], index: 3, kind: output, shape index: {}]
  %s4 = sld [smem:[#allocation0]]
  $region30: #{tpu_custom_call.1} parent=0
    _
  %s6 = ssub.s32 1, %s4
  %s7 = scalar_select 0, %s6, %s4
  $region1: #{tpu_custom_call.1} parent=0
    #allocation2 [shape = 'u8[16384]{0}', space=vmem, size = 0x4000, scoped, tag = 'input window, operand 0, single buffered']
    #allocation3 [shape = 's32[1]{0}', space=sflag, size = 0x4, scoped, tag = 'scoped memory for tpu_custom_call.1']
    #allocation4 [shape = 's32[1]{0}', space=sflag, size = 0x4, scoped, tag = 'scoped memory for tpu_custom_call.1']
    #allocation5 [shape = 'u8[16384]{0}', space=vmem, size = 0x4000, scoped, tag = 'input window, operand 1, single buffered']
    #allocation6 [shape = 's32[1]{0}', space=sflag, size = 0x4, scoped, tag = 'scoped memory for tpu_custom_call.1']
    #allocation7 [shape = 'u8[1024]{0}', space=vmem, size = 0x400, scoped, tag = 'output window, operand 0, single buffered']
    %8 = vsyncpa [#allocation3], 0
    %9 = vsyncpa [#allocation6], 0
    %10 = vsyncpa [#allocation4], 0
    // Predicated region
    $region2: #{tpu_custom_call.1} parent=1 // pred_check
      _
    $region3: #{tpu_custom_call.1} parent=1 // pred_check_branch
      %12 = sbr.rel (0) target = $region5
    $region4: #{tpu_custom_call.1} parent=1 // pred_region
      %s14 = ssub.s32 512, 512
      %15 = vsyncadd [#allocation3], %s14
      %s16 = sshll.u32 [#allocation2], 4
      %s17 = int_to_ptr.vmem [resolvable:$true] %s16
      %22 = dma.hbm_to_vmem [thread:$0]  %s0, 512, %s17, [#allocation3], 32, 32, 2
    $region5: #{tpu_custom_call.1} parent=1 // pred_fallthru
      _
    // Predicated region
    $region6: #{tpu_custom_call.1} parent=1 // pred_check
      _
    $region7: #{tpu_custom_call.1} parent=1 // pred_check_branch
      %24 = sbr.rel (0) target = $region9
    $region8: #{tpu_custom_call.1} parent=1 // pred_region
      %s26 = ssub.s32 512, 512
      %27 = vsyncadd [#allocation6], %s26
      %s28 = sshll.u32 [#allocation5], 4
      %s29 = int_to_ptr.vmem [resolvable:$true] %s28
      %34 = dma.hbm_to_vmem [thread:$0]  %s1, 512, %s29, [#allocation6], 128, 128, 8
    $region9: #{tpu_custom_call.1} parent=1 // pred_fallthru
      _
    // Predicated region
    $region10: #{tpu_custom_call.1} parent=1 // pred_check
      _
    $region11: #{tpu_custom_call.1} parent=1 // pred_check_branch
      %36 = sbr.rel (0) target = $region13
    $region12: #{tpu_custom_call.1} parent=1 // pred_region
      _
    $region13: #{tpu_custom_call.1} parent=1 // pred_fallthru
      _
    // Predicated region
    $region14: #{tpu_custom_call.1} parent=1 // pred_check
      _
    $region15: #{tpu_custom_call.1} parent=1 // pred_check_branch
      %38 = sbr.rel (0) target = $region17
    $region16: #{tpu_custom_call.1} parent=1 // pred_region
      %39 = dma.done [#allocation3], 512
    $region17: #{tpu_custom_call.1} parent=1 // pred_fallthru
      _
    // Predicated region
    $region18: #{tpu_custom_call.1} parent=1 // pred_check
      _
    $region19: #{tpu_custom_call.1} parent=1 // pred_check_branch
      %41 = sbr.rel (0) target = $region21
    $region20: #{tpu_custom_call.1} parent=1 // pred_region
      %42 = dma.done [#allocation6], 512
    $region21: #{tpu_custom_call.1} parent=1 // pred_fallthru
      _
    %v43 = vld [vmem:[#allocation2] sm:$0x3]
    %s44 = scalar_lea.vmem [#allocation2], 2
    %v45 = vld [vmem:[%s44] sm:$0x3]
    %s46 = scalar_lea.vmem [#allocation2], 4
    %v47 = vld [vmem:[%s46] sm:$0x3]
    %s48 = scalar_lea.vmem [#allocation2], 6
    %v49 = vld [vmem:[%s48] sm:$0x3]
    %s50 = scalar_lea.vmem [#allocation2], 8
    %v51 = vld [vmem:[%s50] sm:$0x3]
    %s52 = scalar_lea.vmem [#allocation2], 10
    %v53 = vld [vmem:[%s52] sm:$0x3]
    %s54 = scalar_lea.vmem [#allocation2], 12
    %v55 = vld [vmem:[%s54] sm:$0x3]
    %s56 = scalar_lea.vmem [#allocation2], 14
    %v57 = vld [vmem:[%s56] sm:$0x3]
    %s58 = scalar_lea.vmem [#allocation2], 16
    %v59 = vld [vmem:[%s58] sm:$0x3]
    %s60 = scalar_lea.vmem [#allocation2], 18
    %v61 = vld [vmem:[%s60] sm:$0x3]
    %s62 = scalar_lea.vmem [#allocation2], 20
    %v63 = vld [vmem:[%s62] sm:$0x3]
    %s64 = scalar_lea.vmem [#allocation2], 22
    %v65 = vld [vmem:[%s64] sm:$0x3]
    %s66 = scalar_lea.vmem [#allocation2], 24
    %v67 = vld [vmem:[%s66] sm:$0x3]
    %s68 = scalar_lea.vmem [#allocation2], 26
    %v69 = vld [vmem:[%s68] sm:$0x3]
    %s70 = scalar_lea.vmem [#allocation2], 28
    %v71 = vld [vmem:[%s70] sm:$0x3]
    %s72 = scalar_lea.vmem [#allocation2], 30
    %v73 = vld [vmem:[%s72] sm:$0x3]
    %v74 = vmax.f32 %v43, %v45
    %v75 = vmax.f32 %v47, %v49
    %v76 = vmax.f32 %v51, %v53
    %v77 = vmax.f32 %v55, %v57
    %v78 = vmax.f32 %v59, %v61
    %v79 = vmax.f32 %v63, %v65
    %v80 = vmax.f32 %v67, %v69
    %v81 = vmax.f32 %v71, %v73
    %v82 = vmax.f32 %v74, %v75
    %v83 = vmax.f32 %v76, %v77
    %v84 = vmax.f32 %v78, %v79
    %v85 = vmax.f32 %v80, %v81
    %v86 = vmax.f32 %v82, %v83
    %v87 = vmax.f32 %v84, %v85
    %v88 = vmax.f32 %v86, %v87
    %v89 = vlaneseq
    %v90 = vshrl.u32 %v89, 7
    %v91 = vadd.s32 %v90, 8
    %v92 = vadd.s32 %v90, 16
    %v93 = vadd.s32 %v90, 24
    %v94 = vlaneseq
    %v95 = vand.u32 %v94, 127
    %v96 = vmul.u32 %v95, 4
    %vm97 = vcmp.ge.s32.totalorder %v90, %v96
    %vm98 = vcmp.ge.s32.totalorder %v91, %v96
    %vm99 = vcmp.ge.s32.totalorder %v92, %v96
    %vm100 = vcmp.ge.s32.totalorder %v93, %v96
    %v101 = vadd.s32 %v95, 1
    %v102 = vmul.u32 %v101, 4
    %vm103 = vcmp.lt.s32.totalorder %v90, %v102
    %vm104 = vcmp.lt.s32.totalorder %v91, %v102
    %vm105 = vcmp.lt.s32.totalorder %v92, %v102
    %vm106 = vcmp.lt.s32.totalorder %v93, %v102
    %vm107 = vmand %vm97, %vm103
    %vm108 = vmand %vm98, %vm104
    %vm109 = vmand %vm99, %vm105
    %vm110 = vmand %vm100, %vm106
    %v111 = vsel %vm107, 1, 0
    %v112 = vsel %vm108, 1, 0
    %v113 = vsel %vm109, 1, 0
    %v114 = vsel %vm110, 1, 0
    %v115 = vcvt.s32.f32 %v111
    %v116 = vcvt.s32.f32 %v112
    %v117 = vcvt.s32.f32 %v113
    %v118 = vcvt.s32.f32 %v114
    %v119 = vmul.u32 %v90, 4
    %vm120 = vcmp.ge.s32.totalorder %v95, %v119
    %v121 = vadd.s32 %v90, 1
    %v122 = vmul.u32 %v121, 4
    %vm123 = vcmp.lt.s32.totalorder %v95, %v122
    %vm124 = vmand %vm120, %vm123
    %v125 = vsel %vm124, 1, 0
    %v126 = vcvt.s32.f32 %v125
    %vm127 = vcmask 254976
    %v128 = vsel %vm127, %v88, 0.0
    %v129 = vrot.slane %v128, 4
    %v130 = vadd.f32 %v128, %v129
    %v131 = vrot.slane %v130, 2
    %v132 = vadd.f32 %v130, %v131
    %v133 = vrot.slane %v132, 1
    %v134 = vadd.f32 %v132, %v133
    %vm135 = vcmask 261120
    %v137 = vsel %vm135, %v134, 0
    %139 = vmatprep.subr.mxu0 0.0
    %140 = vmatpush1.msra.mxu0 %v115
    %141 = vmatprep.subr.mxu0 0.0
    %142 = vmatpush1.msra.mxu0 %v116
    %143 = vmatprep.subr.mxu0 0.0
    %144 = vmatpush1.msra.mxu0 %v117
    %145 = vmatprep.subr.mxu0 0.0
    %146 = vmatpush1.msra.mxu0 %v118
    %147 = vmatprep.subr.mxu0 0.0
    %148 = vmatpush1.msra.mxu0 0.0
    %149 = vmatprep.subr.mxu0 0.0
    %150 = vmatpush1.msra.mxu0 0.0
    %151 = vmatprep.subr.mxu0 0.0
    %152 = vmatpush1.msra.mxu0 0.0
    %153 = vmatprep.subr.mxu0 0.0
    %154 = vmatpush1.msra.mxu0 0.0
    %155 = vmatprep.subr.mxu0 0.0
    %156 = vmatpush1.msra.mxu0 0.0
    %157 = vmatprep.subr.mxu0 0.0
    %158 = vmatpush1.msra.mxu0 0.0
    %159 = vmatprep.subr.mxu0 0.0
    %160 = vmatpush1.msra.mxu0 0.0
    %161 = vmatprep.subr.mxu0 0.0
    %162 = vmatpush1.msra.mxu0 0.0
    %163 = vmatprep.subr.mxu0 0.0
    %164 = vmatpush1.msra.mxu0 0.0
    %165 = vmatprep.subr.mxu0 0.0
    %166 = vmatpush1.msra.mxu0 0.0
    %167 = vmatprep.subr.mxu0 0.0
    %168 = vmatpush1.msra.mxu0 0.0
    %169 = vmatprep.subr.mxu0 0.0
    %170 = vmatpush1.msra.mxu0 0.0
    %171 = vmatprep.subr.mxu0 0.0
    %172 = vmatpush1.msra.mxu0 0.0
    %173 = vmatprep.subr.mxu0 0.0
    %174 = vmatpush1.msra.mxu0 0.0
    %175 = vmatprep.subr.mxu0 0.0
    %176 = vmatpush1.msra.mxu0 0.0
    %177 = vmatprep.subr.mxu0 0.0
    %178 = vmatpush1.msra.mxu0 0.0
    %179 = vmatprep.subr.mxu0 0.0
    %180 = vmatpush1.msra.mxu0 0.0
    %181 = vmatprep.subr.mxu0 0.0
    %182 = vmatpush1.msra.mxu0 0.0
    %183 = vmatprep.subr.mxu0 0.0
    %184 = vmatpush1.msra.mxu0 0.0
    %185 = vmatprep.subr.mxu0 0.0
    %186 = vmatpush1.msra.mxu0 0.0
    %187 = vmatprep.subr.mxu0 0.0
    %188 = vmatpush1.msra.mxu0 0.0
    %189 = vmatprep.subr.mxu0 0.0
    %190 = vmatpush1.msra.mxu0 0.0
    %191 = vmatprep.subr.mxu0 0.0
    %192 = vmatpush1.msra.mxu0 0.0
    %193 = vmatprep.subr.mxu0 0.0
    %194 = vmatpush1.msra.mxu0 0.0
    %195 = vmatprep.subr.mxu0 0.0
    %196 = vmatpush1.msra.mxu0 0.0
    %197 = vmatprep.subr.mxu0 0.0
    %198 = vmatpush1.msra.mxu0 0.0
    %199 = vmatprep.subr.mxu0 0.0
    %200 = vmatpush1.msra.mxu0 0.0
    %201 = vmatprep.subr.mxu0 0.0
    %202 = vmatpush1.msra.mxu0 0.0
    %203 = vmatprep.mubr.f32.mxu0 0.0
    %204 = vmatmul.mubr.f32.gmra.mrb[0].mxu0 %v137
    %v205 = vpop.f32.mrb[0].mxu0
    %v206 = vadd.f32 0.0, %v205
    %v207 = vpop.f32.mrb[0].mxu0
    %208 = vdwg.mxu0
    %v209 = vmul.f32 %v206, 0.125
    %vm210 = vcmask 64512
    %v212 = vsel %vm210, %v209, 0
    %214 = vmatprep.subr.mxu0 0.0
    %215 = vmatpush1.msra.mxu0 %v126
    %216 = vmatprep.subr.mxu0 0.0
    %217 = vmatpush1.msra.mxu0 0.0
    %218 = vmatprep.subr.mxu0 0.0
    %219 = vmatpush1.msra.mxu0 0.0
    %220 = vmatprep.subr.mxu0 0.0
    %221 = vmatpush1.msra.mxu0 0.0
    %222 = vmatprep.subr.mxu0 0.0
    %223 = vmatpush1.msra.mxu0 0.0
    %224 = vmatprep.subr.mxu0 0.0
    %225 = vmatpush1.msra.mxu0 0.0
    %226 = vmatprep.subr.mxu0 0.0
    %227 = vmatpush1.msra.mxu0 0.0
    %228 = vmatprep.subr.mxu0 0.0
    %229 = vmatpush1.msra.mxu0 0.0
    %230 = vmatprep.subr.mxu0 0.0
    %231 = vmatpush1.msra.mxu0 0.0
    %232 = vmatprep.subr.mxu0 0.0
    %233 = vmatpush1.msra.mxu0 0.0
    %234 = vmatprep.subr.mxu0 0.0
    %235 = vmatpush1.msra.mxu0 0.0
    %236 = vmatprep.subr.mxu0 0.0
    %237 = vmatpush1.msra.mxu0 0.0
    %238 = vmatprep.subr.mxu0 0.0
    %239 = vmatpush1.msra.mxu0 0.0
    %240 = vmatprep.subr.mxu0 0.0
    %241 = vmatpush1.msra.mxu0 0.0
    %242 = vmatprep.subr.mxu0 0.0
    %243 = vmatpush1.msra.mxu0 0.0
    %244 = vmatprep.subr.mxu0 0.0
    %245 = vmatpush1.msra.mxu0 0.0
    %246 = vmatprep.subr.mxu0 0.0
    %247 = vmatpush1.msra.mxu0 0.0
    %248 = vmatprep.subr.mxu0 0.0
    %249 = vmatpush1.msra.mxu0 0.0
    %250 = vmatprep.subr.mxu0 0.0
    %251 = vmatpush1.msra.mxu0 0.0
    %252 = vmatprep.subr.mxu0 0.0
    %253 = vmatpush1.msra.mxu0 0.0
    %254 = vmatprep.subr.mxu0 0.0
    %255 = vmatpush1.msra.mxu0 0.0
    %256 = vmatprep.subr.mxu0 0.0
    %257 = vmatpush1.msra.mxu0 0.0
    %258 = vmatprep.subr.mxu0 0.0
    %259 = vmatpush1.msra.mxu0 0.0
    %260 = vmatprep.subr.mxu0 0.0
    %261 = vmatpush1.msra.mxu0 0.0
    %262 = vmatprep.subr.mxu0 0.0
    %263 = vmatpush1.msra.mxu0 0.0
    %264 = vmatprep.subr.mxu0 0.0
    %265 = vmatpush1.msra.mxu0 0.0
    %266 = vmatprep.subr.mxu0 0.0
    %267 = vmatpush1.msra.mxu0 0.0
    %268 = vmatprep.subr.mxu0 0.0
    %269 = vmatpush1.msra.mxu0 0.0
    %270 = vmatprep.subr.mxu0 0.0
    %271 = vmatpush1.msra.mxu0 0.0
    %272 = vmatprep.subr.mxu0 0.0
    %273 = vmatpush1.msra.mxu0 0.0
    %274 = vmatprep.subr.mxu0 0.0
    %275 = vmatpush1.msra.mxu0 0.0
    %276 = vmatprep.subr.mxu0 0.0
    %277 = vmatpush1.msra.mxu0 0.0
    %278 = vmatprep.mubr.f32.mxu0 0.0
    %279 = vmatmul.mubr.f32.gmra.mrb[0].mxu0 %v212
    %v280 = vpop.f32.mrb[0].mxu0
    %v281 = vadd.f32 0.0, %v280
    %v282 = vpop.f32.mrb[0].mxu0
    %283 = vdwg.mxu0
    %v284 = vlaneseq
    %v285 = vshrl.u32 %v284, 7
    %v286 = vsub.s32 0, %v285
    %v287 = vrot.slane %v281, %v286
    %v288 = vsub.f32 %v88, %v287
    %v289 = vmul.f32 %v288, %v288
    %v290 = vsel %vm127, %v289, 0.0
    %v291 = vrot.slane %v290, 4
    %v292 = vadd.f32 %v290, %v291
    %v293 = vrot.slane %v292, 2
    %v294 = vadd.f32 %v292, %v293
    %v295 = vrot.slane %v294, 1
    %v296 = vadd.f32 %v294, %v295
    %v298 = vsel %vm135, %v296, 0
    %300 = vmatprep.subr.mxu0 0.0
    %301 = vmatpush1.msra.mxu0 %v115
    %302 = vmatprep.subr.mxu0 0.0
    %303 = vmatpush1.msra.mxu0 %v116
    %304 = vmatprep.subr.mxu0 0.0
    %305 = vmatpush1.msra.mxu0 %v117
    %306 = vmatprep.subr.mxu0 0.0
    %307 = vmatpush1.msra.mxu0 %v118
    %308 = vmatprep.subr.mxu0 0.0
    %309 = vmatpush1.msra.mxu0 0.0
    %310 = vmatprep.subr.mxu0 0.0
    %311 = vmatpush1.msra.mxu0 0.0
    %312 = vmatprep.subr.mxu0 0.0
    %313 = vmatpush1.msra.mxu0 0.0
    %314 = vmatprep.subr.mxu0 0.0
    %315 = vmatpush1.msra.mxu0 0.0
    %316 = vmatprep.subr.mxu0 0.0
    %317 = vmatpush1.msra.mxu0 0.0
    %318 = vmatprep.subr.mxu0 0.0
    %319 = vmatpush1.msra.mxu0 0.0
    %320 = vmatprep.subr.mxu0 0.0
    %321 = vmatpush1.msra.mxu0 0.0
    %322 = vmatprep.subr.mxu0 0.0
    %323 = vmatpush1.msra.mxu0 0.0
    %324 = vmatprep.subr.mxu0 0.0
    %325 = vmatpush1.msra.mxu0 0.0
    %326 = vmatprep.subr.mxu0 0.0
    %327 = vmatpush1.msra.mxu0 0.0
    %328 = vmatprep.subr.mxu0 0.0
    %329 = vmatpush1.msra.mxu0 0.0
    %330 = vmatprep.subr.mxu0 0.0
    %331 = vmatpush1.msra.mxu0 0.0
    %332 = vmatprep.subr.mxu0 0.0
    %333 = vmatpush1.msra.mxu0 0.0
    %334 = vmatprep.subr.mxu0 0.0
    %335 = vmatpush1.msra.mxu0 0.0
    %336 = vmatprep.subr.mxu0 0.0
    %337 = vmatpush1.msra.mxu0 0.0
    %338 = vmatprep.subr.mxu0 0.0
    %339 = vmatpush1.msra.mxu0 0.0
    %340 = vmatprep.subr.mxu0 0.0
    %341 = vmatpush1.msra.mxu0 0.0
    %342 = vmatprep.subr.mxu0 0.0
    %343 = vmatpush1.msra.mxu0 0.0
    %344 = vmatprep.subr.mxu0 0.0
    %345 = vmatpush1.msra.mxu0 0.0
    %346 = vmatprep.subr.mxu0 0.0
    %347 = vmatpush1.msra.mxu0 0.0
    %348 = vmatprep.subr.mxu0 0.0
    %349 = vmatpush1.msra.mxu0 0.0
    %350 = vmatprep.subr.mxu0 0.0
    %351 = vmatpush1.msra.mxu0 0.0
    %352 = vmatprep.subr.mxu0 0.0
    %353 = vmatpush1.msra.mxu0 0.0
    %354 = vmatprep.subr.mxu0 0.0
    %355 = vmatpush1.msra.mxu0 0.0
    %356 = vmatprep.subr.mxu0 0.0
    %357 = vmatpush1.msra.mxu0 0.0
    %358 = vmatprep.subr.mxu0 0.0
    %359 = vmatpush1.msra.mxu0 0.0
    %360 = vmatprep.subr.mxu0 0.0
    %361 = vmatpush1.msra.mxu0 0.0
    %362 = vmatprep.subr.mxu0 0.0
    %363 = vmatpush1.msra.mxu0 0.0
    %364 = vmatprep.mubr.f32.mxu0 0.0
    %365 = vmatmul.mubr.f32.gmra.mrb[0].mxu0 %v298
    %v366 = vpop.f32.mrb[0].mxu0
    %v367 = vadd.f32 0.0, %v366
    %v368 = vpop.f32.mrb[0].mxu0
    %369 = vdwg.mxu0
    %v370 = vmul.f32 %v367, 0.125
    %v371 = vadd.f32 %v370, 1e-05
    %v372 = vrsqrt.pop %v371
    %v374 = vsel %vm210, %v372, 0
    %376 = vmatprep.subr.mxu0 0.0
    %377 = vmatpush1.msra.mxu0 %v126
    %378 = vmatprep.subr.mxu0 0.0
    %379 = vmatpush1.msra.mxu0 0.0
    %380 = vmatprep.subr.mxu0 0.0
    %381 = vmatpush1.msra.mxu0 0.0
    %382 = vmatprep.subr.mxu0 0.0
    %383 = vmatpush1.msra.mxu0 0.0
    %384 = vmatprep.subr.mxu0 0.0
    %385 = vmatpush1.msra.mxu0 0.0
    %386 = vmatprep.subr.mxu0 0.0
    %387 = vmatpush1.msra.mxu0 0.0
    %388 = vmatprep.subr.mxu0 0.0
    %389 = vmatpush1.msra.mxu0 0.0
    %390 = vmatprep.subr.mxu0 0.0
    %391 = vmatpush1.msra.mxu0 0.0
    %392 = vmatprep.subr.mxu0 0.0
    %393 = vmatpush1.msra.mxu0 0.0
    %394 = vmatprep.subr.mxu0 0.0
    %395 = vmatpush1.msra.mxu0 0.0
    %396 = vmatprep.subr.mxu0 0.0
    %397 = vmatpush1.msra.mxu0 0.0
    %398 = vmatprep.subr.mxu0 0.0
    %399 = vmatpush1.msra.mxu0 0.0
    %400 = vmatprep.subr.mxu0 0.0
    %401 = vmatpush1.msra.mxu0 0.0
    %402 = vmatprep.subr.mxu0 0.0
    %403 = vmatpush1.msra.mxu0 0.0
    %404 = vmatprep.subr.mxu0 0.0
    %405 = vmatpush1.msra.mxu0 0.0
    %406 = vmatprep.subr.mxu0 0.0
    %407 = vmatpush1.msra.mxu0 0.0
    %408 = vmatprep.subr.mxu0 0.0
    %409 = vmatpush1.msra.mxu0 0.0
    %410 = vmatprep.subr.mxu0 0.0
    %411 = vmatpush1.msra.mxu0 0.0
    %412 = vmatprep.subr.mxu0 0.0
    %413 = vmatpush1.msra.mxu0 0.0
    %414 = vmatprep.subr.mxu0 0.0
    %415 = vmatpush1.msra.mxu0 0.0
    %416 = vmatprep.subr.mxu0 0.0
    %417 = vmatpush1.msra.mxu0 0.0
    %418 = vmatprep.subr.mxu0 0.0
    %419 = vmatpush1.msra.mxu0 0.0
    %420 = vmatprep.subr.mxu0 0.0
    %421 = vmatpush1.msra.mxu0 0.0
    %422 = vmatprep.subr.mxu0 0.0
    %423 = vmatpush1.msra.mxu0 0.0
    %424 = vmatprep.subr.mxu0 0.0
    %425 = vmatpush1.msra.mxu0 0.0
    %426 = vmatprep.subr.mxu0 0.0
    %427 = vmatpush1.msra.mxu0 0.0
    %428 = vmatprep.subr.mxu0 0.0
    %429 = vmatpush1.msra.mxu0 0.0
    %430 = vmatprep.subr.mxu0 0.0
    %431 = vmatpush1.msra.mxu0 0.0
    %432 = vmatprep.subr.mxu0 0.0
    %433 = vmatpush1.msra.mxu0 0.0
    %434 = vmatprep.subr.mxu0 0.0
    %435 = vmatpush1.msra.mxu0 0.0
    %436 = vmatprep.subr.mxu0 0.0
    %437 = vmatpush1.msra.mxu0 0.0
    %438 = vmatprep.subr.mxu0 0.0
    %439 = vmatpush1.msra.mxu0 0.0
    %440 = vmatprep.mubr.f32.mxu0 0.0
    %441 = vmatmul.mubr.f32.gmra.mrb[0].mxu0 %v374
    %v442 = vpop.f32.mrb[0].mxu0
    %v443 = vadd.f32 0.0, %v442
    %v444 = vpop.f32.mrb[0].mxu0
    %445 = vdwg.mxu0
    %v446 = vlaneseq
    %v447 = vshrl.u32 %v446, 7
    %v448 = vsub.s32 0, %v447
    %v449 = vrot.slane %v443, %v448
    %v450 = vmul.f32 %v288, %v449
    %v451 = vld [vmem:[#allocation5] sm:$0xff]
    %v452 = vld [vmem:[#allocation5 + $0x8] sm:$0xff]
    %v453 = vld [vmem:[#allocation5 + $0x10] sm:$0xff]
    %v454 = vld [vmem:[#allocation5 + $0x18] sm:$0xff]
    %v455 = vld [vmem:[%s2] sm:$0x1]
    %v457 = vlaneseq
    %v458 = vshrl.u32 %v457, 7
    %v459 = vsub.s32 0, %v458
    %v460 = vrot.slane %v455, %v459
    %v463 = vsel %vm135, %v450, 0
    %465 = vmatprep.subr.mxu0 0.0
    %466 = vmatpush1.msra.mxu0 %v451
    %467 = vmatprep.subr.mxu0 0.0
    %468 = vmatpush1.msra.mxu0 %v452
    %469 = vmatprep.subr.mxu0 0.0
    %470 = vmatpush1.msra.mxu0 %v453
    %471 = vmatprep.subr.mxu0 0.0
    %472 = vmatpush1.msra.mxu0 %v454
    %473 = vmatprep.subr.mxu0 0.0
    %474 = vmatpush1.msra.mxu0 0.0
    %475 = vmatprep.subr.mxu0 0.0
    %476 = vmatpush1.msra.mxu0 0.0
    %477 = vmatprep.subr.mxu0 0.0
    %478 = vmatpush1.msra.mxu0 0.0
    %479 = vmatprep.subr.mxu0 0.0
    %480 = vmatpush1.msra.mxu0 0.0
    %481 = vmatprep.subr.mxu0 0.0
    %482 = vmatpush1.msra.mxu0 0.0
    %483 = vmatprep.subr.mxu0 0.0
    %484 = vmatpush1.msra.mxu0 0.0
    %485 = vmatprep.subr.mxu0 0.0
    %486 = vmatpush1.msra.mxu0 0.0
    %487 = vmatprep.subr.mxu0 0.0
    %488 = vmatpush1.msra.mxu0 0.0
    %489 = vmatprep.subr.mxu0 0.0
    %490 = vmatpush1.msra.mxu0 0.0
    %491 = vmatprep.subr.mxu0 0.0
    %492 = vmatpush1.msra.mxu0 0.0
    %493 = vmatprep.subr.mxu0 0.0
    %494 = vmatpush1.msra.mxu0 0.0
    %495 = vmatprep.subr.mxu0 0.0
    %496 = vmatpush1.msra.mxu0 0.0
    %497 = vmatprep.subr.mxu0 0.0
    %498 = vmatpush1.msra.mxu0 0.0
    %499 = vmatprep.subr.mxu0 0.0
    %500 = vmatpush1.msra.mxu0 0.0
    %501 = vmatprep.subr.mxu0 0.0
    %502 = vmatpush1.msra.mxu0 0.0
    %503 = vmatprep.subr.mxu0 0.0
    %504 = vmatpush1.msra.mxu0 0.0
    %505 = vmatprep.subr.mxu0 0.0
    %506 = vmatpush1.msra.mxu0 0.0
    %507 = vmatprep.subr.mxu0 0.0
    %508 = vmatpush1.msra.mxu0 0.0
    %509 = vmatprep.subr.mxu0 0.0
    %510 = vmatpush1.msra.mxu0 0.0
    %511 = vmatprep.subr.mxu0 0.0
    %512 = vmatpush1.msra.mxu0 0.0
    %513 = vmatprep.subr.mxu0 0.0
    %514 = vmatpush1.msra.mxu0 0.0
    %515 = vmatprep.subr.mxu0 0.0
    %516 = vmatpush1.msra.mxu0 0.0
    %517 = vmatprep.subr.mxu0 0.0
    %518 = vmatpush1.msra.mxu0 0.0
    %519 = vmatprep.subr.mxu0 0.0
    %520 = vmatpush1.msra.mxu0 0.0
    %521 = vmatprep.subr.mxu0 0.0
    %522 = vmatpush1.msra.mxu0 0.0
    %523 = vmatprep.subr.mxu0 0.0
    %524 = vmatpush1.msra.mxu0 0.0
    %525 = vmatprep.subr.mxu0 0.0
    %526 = vmatpush1.msra.mxu0 0.0
    %527 = vmatprep.subr.mxu0 0.0
    %528 = vmatpush1.msra.mxu0 0.0
    %529 = vmatprep.mubr.f32.mxu0 0.0
    %530 = vmatmul.mubr.f32.gmra.mrb[0].mxu0 %v463
    %v531 = vpop.f32.mrb[0].mxu0
    %v532 = vadd.f32 %v460, %v531
    %v533 = vpop.f32.mrb[0].mxu0
    %534 = vdwg.mxu0
    %535 = vst [vmem:[#allocation7] sm:$0x3] %v532
    // Predicated region
    $region22: #{tpu_custom_call.1} parent=1 // pred_check
      _
    $region23: #{tpu_custom_call.1} parent=1 // pred_check_branch
      %537 = sbr.rel (0) target = $region25
    $region24: #{tpu_custom_call.1} parent=1 // pred_region
      %s539 = ssub.s32 32, 32
      %540 = vsyncadd [#allocation4], %s539
      %s542 = sshll.u32 [#allocation7], 4
      %s543 = int_to_ptr.vmem [resolvable:$true] %s542
      %545 = dma.vmem_to_hbm [thread:$0]  %s543, 32, %s3, [#allocation4]
    $region25: #{tpu_custom_call.1} parent=1 // pred_fallthru
      _
    // Predicated region
    $region26: #{tpu_custom_call.1} parent=1 // pred_check
      _
    $region27: #{tpu_custom_call.1} parent=1 // pred_check_branch
      %547 = sbr.rel (0) target = $region29
    $region28: #{tpu_custom_call.1} parent=1 // pred_region
      %548 = dma.done [#allocation4], 32
    $region29: #{tpu_custom_call.1} parent=1 // pred_fallthru
      _
    %549 = vsyncpa [#allocation3], 1
    %550 = vsyncpa [#allocation6], 1
    %551 = vsyncpa [#allocation4], 1

</llo_original>
